<compile_context>
chip_gen: v6e
topology: v6e:2x2x1
jax: 0.10.0
libtpu: 0.0.40
codegen_flags: <defaults>
</compile_context>

<pallas_src>
import math
import functools

import jax
import jax.numpy as jnp
from jax import lax
from jax.experimental import pallas as pl
from jax.experimental.pallas import tpu as pltpu


def _round_up(x, m):
    return ((x + m - 1) // m) * m


# ----------------------------------------------------------------------- value projection
def _value_proj_kernel(x_ref, wv_ref, bv_ref, v_ref):
    v = jnp.dot(x_ref[0], wv_ref[...], preferred_element_type=jnp.float32) + bv_ref[...]
    v_ref[0] = v.astype(v_ref.dtype)


def value_projection(input_flatten, Wv, bv, out_dtype, row_block=512):
    """value = input_flatten @ Wv + bv, emitted directly in out_dtype (bf16)."""
    N, Len_in, C = input_flatten.shape
    # capped row block + padded remainder; never a single full-Len_in block.
    rb = min(_round_up(min(row_block, Len_in), 8), _round_up(Len_in, 8))
    Len_pad = _round_up(Len_in, rb)
    x = input_flatten
    if Len_pad != Len_in:
        x = jnp.pad(x, ((0, 0), (0, Len_pad - Len_in), (0, 0)))
    out = pl.pallas_call(
        _value_proj_kernel,
        out_shape=jax.ShapeDtypeStruct((N, Len_pad, C), out_dtype),
        grid_spec=pltpu.PrefetchScalarGridSpec(
            num_scalar_prefetch=0,
            grid=(N, Len_pad // rb),
            in_specs=[
                pl.BlockSpec((1, rb, C), lambda b, r: (b, r, 0)),
                pl.BlockSpec((C, C), lambda b, r: (0, 0)),
                pl.BlockSpec((1, C), lambda b, r: (0, 0)),
            ],
            out_specs=pl.BlockSpec((1, rb, C), lambda b, r: (b, r, 0)),
        ),
        compiler_params=pltpu.CompilerParams(
            dimension_semantics=("parallel", "parallel")),
    )(x, Wv, bv)
    return out[:, :Len_in] if Len_pad != Len_in else out


# ----------------------------------------------------------------------- main fused kernel
def _msdeform_head_kernel(q_ref, bbox_ref, mask_ref, wq_ref, bq_ref, wo_ref, bo_ref,
                          *rest, n_heads, n_levels, n_points, d_head,
                          spatial_shapes, mask_hw, sampling_dtype):
    L, P, Dh = n_levels, n_points, d_head
    LP = L * P
    Hm, Wm = mask_hw
    val_refs = rest[:L]          # L x (1, 1, Hl, Wl*Dh) bf16 -- this head's value slabs
    o_ref = rest[L]              # (1, tq, C)
    ho_ref = rest[L + 1]         # (tq, H, Dh) f32 scratch, persists across the head axis

    h = pl.program_id(2)

    q = q_ref[0]                 # (tq, C) f32
    bbox = bbox_ref[0]           # (tq, 4) f32, normalized (cx, cy, w, h)
    tq = q.shape[0]

    # ---- fused per-head query projection: one MXU pass over [Wx_h | Wy_h | Wa_h] ----
    proj = jnp.dot(q, wq_ref[0], preferred_element_type=jnp.float32) + bq_ref[0]
    off_x = proj[:, 0:LP]
    off_y = proj[:, LP:2 * LP]
    logits = proj[:, 2 * LP:3 * LP]

    # ---- sampling locations from the precomputed mask bounding boxes ----
    cx = bbox[:, 0:1]; cy = bbox[:, 1:2]; bw = bbox[:, 2:3]; bh = bbox[:, 3:4]
    loc_x = cx + off_x * (bw * (0.5 / P))        # (tq, LP), normalized [0, 1]
    loc_y = cy + off_y * (bh * (0.5 / P))

    # ---- point-in-mask penalty: separable one-hot contraction on the flat bf16 mask ----
    mask3 = mask_ref[0].reshape(tq, Hm, Wm)                                  # bf16 0/1
    ix = jnp.clip(jnp.floor(loc_x * Wm), 0.0, Wm - 1.0).astype(jnp.int32)    # (tq, LP)
    iy = jnp.clip(jnp.floor(loc_y * Hm), 0.0, Hm - 1.0).astype(jnp.int32)
    iota_h = lax.broadcasted_iota(jnp.int32, (1, 1, Hm), 2)
    iota_w = lax.broadcasted_iota(jnp.int32, (1, 1, Wm), 2)
    oh_y = (iy[:, :, None] == iota_h).astype(mask3.dtype)                    # (tq, LP, Hm)
    oh_x = (ix[:, :, None] == iota_w).astype(jnp.float32)                    # (tq, LP, Wm)
    rows = jnp.einsum('qch,qhw->qcw', oh_y, mask3,
                      preferred_element_type=jnp.float32)                    # (tq, LP, Wm)
    mask_at = jnp.sum(rows * oh_x, axis=2)                                   # (tq, LP) 0/1
    logits = logits * mask_at

    # ---- exact per-head softmax over the L*P points (per-head max, exact divide) ----
    m = jnp.max(logits, axis=1, keepdims=True)
    e = jnp.exp(logits - m)
    w = e / jnp.sum(e, axis=1, keepdims=True)                                # (tq, LP) f32

    # ---- multi-scale deformable sampling: separable bilinear, stage 1 on the MXU ----
    head_acc = jnp.zeros((tq, Dh), jnp.float32)
    for l in range(L):
        Hl, Wl = spatial_shapes[l]
        v_hl = val_refs[l][0, 0]                                             # (Hl, Wl*Dh) bf16
        ygrid = lax.broadcasted_iota(jnp.int32, (1, Hl), 1).astype(jnp.float32)
        xgrid = lax.broadcasted_iota(jnp.int32, (1, Wl), 1).astype(jnp.float32)
        for p in range(P):
            c = l * P + p
            py = loc_y[:, c:c + 1] * Hl - 0.5                                # (tq, 1)
            px = loc_x[:, c:c + 1] * Wl - 0.5
            # stage 1 (MXU): contract the y tri-kernel against the (Hl, Wl*Dh) value slab;
            # exactly reproduces grid_sample(align_corners=False, padding='zeros').
            tri_y = jnp.maximum(0.0, 1.0 - jnp.abs(py - ygrid))              # (tq, Hl)
            t = jnp.dot(tri_y.astype(sampling_dtype), v_hl,
                        preferred_element_type=jnp.float32)                  # (tq, Wl*Dh)
            # stage 2 (VPU/XLU): x tri-kernel with the softmax weight folded in.
            tri_xw = jnp.maximum(0.0, 1.0 - jnp.abs(px - xgrid)) * w[:, c:c + 1]  # (tq, Wl)
            head_acc = head_acc + jnp.sum(
                t.reshape(tq, Wl, Dh) * tri_xw[:, :, None], axis=1)          # (tq, Dh)

    # ---- stash this head's output; merge the output projection at the last head ----
    ho_ref[:, pl.ds(h, 1), :] = head_acc[:, None, :]

    @pl.when(h == n_heads - 1)
    def _():
        ho = ho_ref[...].reshape(tq, n_heads * Dh)                           # (tq, C)
        out = jnp.dot(ho, wo_ref[...], preferred_element_type=jnp.float32) + bo_ref[...]
        o_ref[0] = out.astype(o_ref.dtype)


# ----------------------------------------------------------------------- forward wrapper
def ms_deform_attn_mask_forward(params, query, reference_bboxs, reference_masks,
                                mask_threshold, input_flatten, input_spatial_shapes,
                                input_level_start_index, input_padding_mask=None,
                                q_tile=128, sampling_dtype=jnp.bfloat16,
                                value_row_block=512):
    """type_sampling_location == 'mask' forward. spatial shapes / level starts are static."""
    del reference_bboxs, mask_threshold      # unused in 'mask' mode
    N, Lq, C = query.shape
    _, Len_in, _ = input_flatten.shape
    Hm, Wm = reference_masks.shape[2:]
    H, P = params["n_heads"], params["n_points"]
    L = len(input_spatial_shapes)
    Dh = C // H
    LP = L * P
    spatial_shapes = tuple((int(a), int(b)) for a, b in input_spatial_shapes)
    assert sum(a * b for a, b in spatial_shapes) == Len_in
    off = 0
    for l, (a, b) in enumerate(spatial_shapes):
        assert int(input_level_start_index[l]) == off
        off += a * b

    # ---- host/XLA-side prep (cheap; keeps every kernel input lane-dense) ----
    masks_f = (reference_masks > 0).astype(jnp.float32)            # (N, Lq, Hm, Wm)

    # get_bounding_boxes: tight normalized (cx, cy, w, h) of each boolean mask.
    col_any = masks_f.max(axis=2)                                  # (N, Lq, Wm)
    row_any = masks_f.max(axis=3)                                  # (N, Lq, Hm)
    xs = jnp.arange(Wm, dtype=jnp.float32)
    ys = jnp.arange(Hm, dtype=jnp.float32)
    BIG = 1e9
    x_min = jnp.min(jnp.where(col_any > 0, xs, BIG), axis=2)
    x_max = jnp.max(jnp.where(col_any > 0, xs, -BIG), axis=2)
    y_min = jnp.min(jnp.where(row_any > 0, ys, BIG), axis=2)
    y_max = jnp.max(jnp.where(row_any > 0, ys, -BIG), axis=2)
    has = col_any.max(axis=2) > 0
    cx = jnp.where(has, (x_min + x_max + 1.0) * 0.5 / Wm, 0.5)
    cy = jnp.where(has, (y_min + y_max + 1.0) * 0.5 / Hm, 0.5)
    bw = jnp.where(has, (x_max - x_min + 1.0) / Wm, 1.0)
    bh = jnp.where(has, (y_max - y_min + 1.0) / Hm, 1.0)
    bbox = jnp.stack([cx, cy, bw, bh], axis=-1)                    # (N, Lq, 4)

    # lane-dense flattened bf16 masks (0/1 exact in bf16)
    mask_flat = masks_f.reshape(N, Lq, Hm * Wm).astype(jnp.bfloat16)

    # per-head fused query-projection weights: (H, C, 3*LP) / (H, 1, 3*LP)
    def _per_head_w(wmat):
        return wmat.reshape(C, H, LP).transpose(1, 0, 2)
    def _per_head_b(bvec):
        return bvec.reshape(1, H, LP).transpose(1, 0, 2)
    Wq = jnp.concatenate([_per_head_w(params["Wx"]), _per_head_w(params["Wy"]),
                          _per_head_w(params["Wa"])], axis=-1)
    bq = jnp.concatenate([_per_head_b(params["bx"]), _per_head_b(params["by"]),
                          _per_head_b(params["ba"])], axis=-1)

    # ---- value projection (own pallas_call; bf16 output) ----
    value = value_projection(input_flatten, params["Wv"], params["bv"],
                             sampling_dtype, row_block=value_row_block)
    if input_padding_mask is not None:
        value = value * (1.0 - input_padding_mask.astype(value.dtype))[..., None]

    # per-level, per-head value slabs (N, H, Hl, Wl*Dh) so stage-1 of the separable
    # bilinear sampler is a single lane-dense MXU dot per (level, point).
    val_levels = []
    start = 0
    for (Hl, Wl) in spatial_shapes:
        v_l = value[:, start:start + Hl * Wl, :]
        v_l = v_l.reshape(N, Hl, Wl, H, Dh).transpose(0, 3, 1, 2, 4).reshape(N, H, Hl, Wl * Dh)
        val_levels.append(v_l)
        start += Hl * Wl

    # ---- query tiling: pad Lq to a tile multiple (no silent full-Lq fallback) ----
    tq = max(8, min(_round_up(q_tile, 8), _round_up(Lq, 8)))
    Lq_pad = _round_up(Lq, tq)
    if Lq_pad != Lq:
        pad = Lq_pad - Lq
        query = jnp.pad(query, ((0, 0), (0, pad), (0, 0)))
        bbox = jnp.pad(bbox, ((0, 0), (0, pad), (0, 0)))
        mask_flat = jnp.pad(mask_flat, ((0, 0), (0, pad), (0, 0)))

    kernel = functools.partial(
        _msdeform_head_kernel, n_heads=H, n_levels=L, n_points=P, d_head=Dh,
        spatial_shapes=spatial_shapes, mask_hw=(Hm, Wm), sampling_dtype=sampling_dtype)

    S = Hm * Wm
    in_specs = [
        pl.BlockSpec((1, tq, C), lambda b, qi, h: (b, qi, 0)),           # query tile
        pl.BlockSpec((1, tq, 4), lambda b, qi, h: (b, qi, 0)),           # mask bbox tile
        pl.BlockSpec((1, tq, S), lambda b, qi, h: (b, qi, 0)),           # flat bf16 masks
        pl.BlockSpec((1, C, 3 * LP), lambda b, qi, h: (h, 0, 0)),        # per-head fused Wq
        pl.BlockSpec((1, 1, 3 * LP), lambda b, qi, h: (h, 0, 0)),        # per-head fused bq
        pl.BlockSpec((C, C), lambda b, qi, h: (0, 0)),                   # Wo (full, for merged dot)
        pl.BlockSpec((1, C), lambda b, qi, h: (0, 0)),                   # bo
    ]
    for (Hl, Wl) in spatial_shapes:                                      # per-head value slabs
        in_specs.append(pl.BlockSpec((1, 1, Hl, Wl * Dh),
                                     lambda b, qi, h: (b, h, 0, 0)))

    # explicit scoped-VMEM budget: double-buffered per-step working set + margin,
    # floored at 32 MiB and capped well below v7x's 64 MiB physical VMEM.
    val_block_bytes = sum(Hl * Wl for Hl, Wl in spatial_shapes) * Dh * 2
    step_bytes = (tq * C * 4 + tq * 4 * 4 + tq * S * 2 + C * 3 * LP * 4
                  + C * C * 4 + val_block_bytes) * 2 + 3 * tq * C * 4
    vmem_limit = int(min(max(4 * step_bytes, 32 * 1024 * 1024), 56 * 1024 * 1024))

    out = pl.pallas_call(
        kernel,
        out_shape=jax.ShapeDtypeStruct((N, Lq_pad, C), jnp.float32),
        grid_spec=pltpu.PrefetchScalarGridSpec(
            num_scalar_prefetch=0,
            grid=(N, Lq_pad // tq, H),
            in_specs=in_specs,
            out_specs=pl.BlockSpec((1, tq, C), lambda b, qi, h: (b, qi, 0)),
            scratch_shapes=[pltpu.VMEM((tq, H, Dh), jnp.float32)],
        ),
        compiler_params=pltpu.CompilerParams(
            dimension_semantics=("parallel", "parallel", "arbitrary"),
            vmem_limit_bytes=vmem_limit),
    )(query, bbox, mask_flat, Wq, bq, params["Wo"], params["bo"], *val_levels)

    return out[:, :Lq] if Lq_pad != Lq else out


# ----------------------------------------------------------------------- params
def init_params(key, d_model, n_heads, n_levels, n_points):
    H, L, P = n_heads, n_levels, n_points
    HLP = H * L * P
    k0, k1, k2, k3 = jax.random.split(key, 4)

    def xavier(k, fin, fout):
        lim = math.sqrt(6.0 / (fin + fout))
        return jax.random.uniform(k, (fin, fout), jnp.float32, -lim, lim)

    # sampling_offsets bias = grid_init as in _reset_parameters, plus small random
    # weights so the matmul path is exercised.
    thetas = jnp.arange(H, dtype=jnp.float32) * (2.0 * math.pi / H)
    grid = jnp.stack([jnp.cos(thetas), jnp.sin(thetas)], axis=-1)            # (H, 2)
    grid = grid / jnp.max(jnp.abs(grid), axis=-1, keepdims=True)
    grid = jnp.tile(grid[:, None, None, :], (1, L, P, 1))                    # (H, L, P, 2)
    grid = grid * jnp.arange(1, P + 1, dtype=jnp.float32)[None, None, :, None]
    b_off = grid.reshape(-1)                                                 # (HLP*2,)
    W_off = 0.01 * jax.random.normal(k2, (d_model, HLP * 2), jnp.float32)

    return dict(
        n_heads=H, n_levels=L, n_points=P,
        Wv=xavier(k0, d_model, d_model), bv=jnp.zeros((1, d_model), jnp.float32),
        Wo=xavier(k1, d_model, d_model), bo=jnp.zeros((1, d_model), jnp.float32),
        Wx=W_off[:, 0::2], bx=b_off[0::2][None, :],
        Wy=W_off[:, 1::2], by=b_off[1::2][None, :],
        Wa=0.05 * jax.random.normal(k3, (d_model, HLP), jnp.float32),
        ba=jnp.zeros((1, HLP), jnp.float32),
    )


# ----------------------------------------------------------------------- pure-JAX reference
def reference_forward(params, query, reference_masks, input_flatten,
                      spatial_shapes, level_start, input_padding_mask=None):
    N, Lq, C = query.shape
    H, P = params["n_heads"], params["n_points"]
    L = len(spatial_shapes)
    Dh = C // H
    LP = L * P
    Hm, Wm = reference_masks.shape[2:]
    maskf = (reference_masks > 0).astype(jnp.float32)

    value = input_flatten @ params["Wv"] + params["bv"]
    if input_padding_mask is not None:
        value = value * (1.0 - input_padding_mask.astype(jnp.float32))[..., None]
    off_x = query @ params["Wx"] + params["bx"]
    off_y = query @ params["Wy"] + params["by"]
    attn = query @ params["Wa"] + params["ba"]

    col_any = maskf.max(axis=2)
    row_any = maskf.max(axis=3)
    xsv = jnp.arange(Wm, dtype=jnp.float32)
    ysv = jnp.arange(Hm, dtype=jnp.float32)
    BIG = 1e9
    x_min = jnp.min(jnp.where(col_any > 0, xsv, BIG), axis=2, keepdims=True)
    x_max = jnp.max(jnp.where(col_any > 0, xsv, -BIG), axis=2, keepdims=True)
    y_min = jnp.min(jnp.where(row_any > 0, ysv, BIG), axis=2, keepdims=True)
    y_max = jnp.max(jnp.where(row_any > 0, ysv, -BIG), axis=2, keepdims=True)
    has = col_any.max(axis=2, keepdims=True) > 0
    cx = jnp.where(has, (x_min + x_max + 1.0) * 0.5 / Wm, 0.5)
    cy = jnp.where(has, (y_min + y_max + 1.0) * 0.5 / Hm, 0.5)
    bw = jnp.where(has, (x_max - x_min + 1.0) / Wm, 1.0)
    bh = jnp.where(has, (y_max - y_min + 1.0) / Hm, 1.0)

    loc_x = cx + off_x / P * bw * 0.5
    loc_y = cy + off_y / P * bh * 0.5

    ix = jnp.clip(jnp.floor(loc_x * Wm), 0, Wm - 1).astype(jnp.int32)
    iy = jnp.clip(jnp.floor(loc_y * Hm), 0, Hm - 1).astype(jnp.int32)
    flat_mask = maskf.reshape(N, Lq, Hm * Wm)
    mask_at = jnp.take_along_axis(flat_mask, iy * Wm + ix, axis=2)
    attn = attn * mask_at

    attn = jax.nn.softmax(attn.reshape(N, Lq, H, LP), axis=-1).reshape(N, Lq, H, L, P)
    loc_x_r = loc_x.reshape(N, Lq, H, L, P)
    loc_y_r = loc_y.reshape(N, Lq, H, L, P)
    value_h = value.reshape(N, -1, H, Dh)

    out = jnp.zeros((N, Lq, H, Dh), jnp.float32)
    for l, (Hl, Wl) in enumerate(spatial_shapes):
        s0 = level_start[l]
        v_l = value_h[:, s0:s0 + Hl * Wl]
        cell = jnp.arange(Hl * Wl, dtype=jnp.float32)
        cell_y = jnp.floor((cell + 0.5) / Wl)
        cell_x = cell - cell_y * Wl
        px = loc_x_r[..., l, :] * Wl - 0.5
        py = loc_y_r[..., l, :] * Hl - 0.5
        tri = (jnp.maximum(0.0, 1.0 - jnp.abs(px[..., None] - cell_x)) *
               jnp.maximum(0.0, 1.0 - jnp.abs(py[..., None] - cell_y)))      # (N,Lq,H,P,HW)
        w = attn[..., l, :]
        wmat = jnp.sum(tri * w[..., None], axis=3)                           # (N,Lq,H,HW)
        out = out + jnp.einsum("nqhs,nshd->nqhd", wmat, v_l)
    out = out.reshape(N, Lq, C)
    return out @ params["Wo"] + params["bo"]


# ----------------------------------------------------------------------- main
if __name__ == "__main__":
    key = jax.random.PRNGKey(0)
    N, Lq, C = 2, 16, 32
    n_heads, n_levels, n_points = 4, 2, 4
    spatial_shapes = ((16, 16), (8, 8))
    level_start = (0, 256)
    Len_in = 256 + 64
    Hm, Wm = 16, 16

    k_param, k_q, k_x, k_m = jax.random.split(key, 4)
    params = init_params(k_param, C, n_heads, n_levels, n_points)
    query = jax.random.normal(k_q, (N, Lq, C), jnp.float32)
    input_flatten = jax.random.normal(k_x, (N, Len_in, C), jnp.float32)

    # rectangular, non-empty boolean reference masks
    kc, ks = jax.random.split(k_m)
    centers = jax.random.uniform(kc, (N, Lq, 2), minval=0.25, maxval=0.75)
    halves = jax.random.uniform(ks, (N, Lq, 2), minval=0.12, maxval=0.35)
    yy = jnp.arange(Hm, dtype=jnp.float32)[:, None]
    xx = jnp.arange(Wm, dtype=jnp.float32)[None, :]
    reference_masks = ((jnp.abs(yy - centers[..., 1, None, None] * Hm) <= halves[..., 1, None, None] * Hm) &
                       (jnp.abs(xx - centers[..., 0, None, None] * Wm) <= halves[..., 0, None, None] * Wm))

    reference_bboxs = jax.random.normal(jax.random.PRNGKey(7), (N, Lq, 4), jnp.float32)  # unused ('mask')
    mask_threshold = 0.5                                                                  # unused ('mask')

    out = ms_deform_attn_mask_forward(params, query, reference_bboxs, reference_masks,
                                      mask_threshold, input_flatten, spatial_shapes,
                                      level_start, input_padding_mask=None)
    out = jax.block_until_ready(out)

    ref = jax.block_until_ready(
        reference_forward(params, query, reference_masks, input_flatten,
                          spatial_shapes, level_start, input_padding_mask=None))

    assert out.shape == (N, Lq, C)
    assert bool(jnp.all(jnp.isfinite(out)))
    max_err = float(jnp.max(jnp.abs(out - ref)))
    # bf16 value / bf16 tri-kernel matmuls (f32 accumulation) -> looser tolerance than
    # a pure-f32 path; softmax itself is exact f32 per head.
    if max_err > 5e-2:
        raise SystemExit(f"mismatch vs reference: max_err={max_err}")
    print("KERNEL_OK")
</pallas_src>

<mosaic_0001>
module attributes {stable_mosaic.version = 11 : i64} {
  func.func @_value_proj_kernel(%arg0: i32, %arg1: i32, %arg2: memref<1x320x32xf32, #tpu.memory_space<vmem>>, %arg3: memref<32x32xf32, #tpu.memory_space<vmem>>, %arg4: memref<1x32xf32, #tpu.memory_space<vmem>>, %arg5: memref<1x320x32xbf16, #tpu.memory_space<vmem>>) attributes {dimension_semantics = [#tpu.dimension_semantics<parallel>, #tpu.dimension_semantics<parallel>], iteration_bounds = array<i64: 2, 1>, scalar_prefetch = 0 : i64, scratch_operands = 0 : i64, tpu.core_type = #tpu.core_type<tc>, window_params = [{transform_indices = @transform_0, window_bounds = array<i64: 1, 320, 32>}, {pipeline_mode = #tpu.pipeline_mode<synchronous>, transform_indices = @transform_1, window_bounds = array<i64: 32, 32>}, {pipeline_mode = #tpu.pipeline_mode<synchronous>, transform_indices = @transform_2, window_bounds = array<i64: 1, 32>}, {transform_indices = @transform_3, window_bounds = array<i64: 1, 320, 32>}]} {
    %c0 = arith.constant 0 : index
    %c0_0 = arith.constant 0 : index
    %c0_1 = arith.constant 0 : index
    %0 = vector.load %arg2[%c0, %c0_0, %c0_1] : memref<1x320x32xf32, #tpu.memory_space<vmem>>, vector<1x320x32xf32>
    %1 = vector.shape_cast %0 : vector<1x320x32xf32> to vector<320x32xf32>
    %c0_2 = arith.constant 0 : index
    %c0_3 = arith.constant 0 : index
    %2 = vector.load %arg3[%c0_2, %c0_3] : memref<32x32xf32, #tpu.memory_space<vmem>>, vector<32x32xf32>
    %cst = arith.constant dense<0.000000e+00> : vector<320x32xf32>
    %3 = tpu.matmul %1, %2, %cst {dimension_numbers = #tpu.dot_dimension_numbers<[1], [0], [0], [1], [0, 0, 1, 1], [], []>} : vector<320x32xf32>, vector<32x32xf32>, vector<320x32xf32> -> vector<320x32xf32>
    %c0_4 = arith.constant 0 : index
    %c0_5 = arith.constant 0 : index
    %4 = vector.load %arg4[%c0_4, %c0_5] : memref<1x32xf32, #tpu.memory_space<vmem>>, vector<1x32xf32>
    %5 = vector.broadcast %4 : vector<1x32xf32> to vector<320x32xf32>
    %6 = arith.addf %3, %5 : vector<320x32xf32>
    %7 = arith.truncf %6 : vector<320x32xf32> to vector<320x32xbf16>
    %c0_6 = arith.constant 0 : index
    %c0_7 = arith.constant 0 : index
    %c0_8 = arith.constant 0 : index
    %8 = vector.load %arg5[%c0_6, %c0_7, %c0_8] : memref<1x320x32xbf16, #tpu.memory_space<vmem>>, vector<1x320x32xbf16>
    %9 = vector.shape_cast %8 : vector<1x320x32xbf16> to vector<320x32xbf16>
    %10 = vector.shape_cast %7 : vector<320x32xbf16> to vector<1x320x32xbf16>
    tpu.vector_store %arg5[%c0_6, %c0_7, %c0_8], %10 {strides = array<i32>} : memref<1x320x32xbf16, #tpu.memory_space<vmem>>, vector<1x320x32xbf16>,
    return
  }
  func.func @transform_0(%arg0: i32, %arg1: i32) -> (i32, i32, i32) {
    %c0_i32 = arith.constant 0 : i32
    %c0_i32_0 = arith.constant 0 : i32
    return %arg0, %arg1, %c0_i32 : i32, i32, i32
  }
  func.func @transform_1(%arg0: i32, %arg1: i32) -> (i32, i32) {
    %c0_i32 = arith.constant 0 : i32
    %c0_i32_0 = arith.constant 0 : i32
    %c0_i32_1 = arith.constant 0 : i32
    return %c0_i32, %c0_i32_0 : i32, i32
  }
  func.func @transform_2(%arg0: i32, %arg1: i32) -> (i32, i32) {
    %c0_i32 = arith.constant 0 : i32
    %c0_i32_0 = arith.constant 0 : i32
    %c0_i32_1 = arith.constant 0 : i32
    return %c0_i32, %c0_i32_0 : i32, i32
  }
  func.func @transform_3(%arg0: i32, %arg1: i32) -> (i32, i32, i32) {
    %c0_i32 = arith.constant 0 : i32
    %c0_i32_0 = arith.constant 0 : i32
    return %arg0, %arg1, %c0_i32 : i32, i32, i32
  }
}

</mosaic_0001>

<llo_original>
// kernel: tpu_custom_call.1
$region0: #{tpu_custom_call.1}
  #allocation0 [shape = 'u32[]', space=smem, size = 0x4, offset = 0x4, fixed_abs, tag = 'smem constant byte address 0x4 - core index']
  #allocation1 [shape = 'u32[144,128]{1,0:T(1,128)}', space=vmem, size = 0x12000, scoped, tag = 'internal scratch']
  %s0 = inlined_call_operand.vmem [shape: f32[2,320,32], index: 0, kind: input, shape index: {}]
  %s1 = inlined_call_operand.vmem [shape: f32[32,32], index: 1, kind: input, shape index: {}]
  %s2 = inlined_call_operand.vmem [shape: f32[1,32], index: 2, kind: input, shape index: {}]
  %s3 = inlined_call_operand.vmem [shape: bf16[2,320,32], index: 3, kind: output, shape index: {}]
  %s4 = sld [smem:[#allocation0]]
  $region45: #{tpu_custom_call.1} parent=0
    _
  %s6 = ssub.s32 1, %s4
  %s7 = scalar_select 0, %s6, %s4
  loop: start=0, step=1, limit=4
  $region2: #{tpu_custom_call.1} parent=0 // loop_pre_header
    _
  $region3: #{tpu_custom_call.1} parent=0 // loop_header
    %s9 = sphi 0, %s13
    %p10 = scmp.ge.s32.totalorder %s9, 4
    %s16 = sphi 0, %s28
    %s17 = sphi 0, %s24
    %s18 = sphi 0, %s16
    %s19 = sphi 0, %s17
    %s20 = sphi 0, %s18
    %s21 = sphi 0, %s19
    %s33 = sphi 0, %s35
    %s36 = sphi 0, %s33
    %s37 = sphi 0, %s36
    %s53 = sphi 0, %s37
    %s57 = sphi 0, %s57
    %s59 = sphi 0, %s57
    %s60 = sphi 0, %s59
    %s74 = sphi 0, %s60
    %s78 = sphi 0, %s78
    %s80 = sphi 0, %s78
    %s81 = sphi 0, %s80
    %s95 = sphi 0, %s81
    %s103 = sphi 0, %s105
    %s106 = sphi 0, %s103
    %s107 = sphi 0, %s106
    %s123 = sphi 0, %s107
  $region4: #{tpu_custom_call.1} parent=0 // loop_header_branch
    %12 = sbr.rel (%p10) target = $region8
  $region5: #{tpu_custom_call.1} parent=0 // loop_body
    %s14 = ssub.s32 %s9, 1
    %s15 = ssub.s32 %s9, 2
    %s22 = sadd.s32 1, %s17
    %p23 = scmp.ge.s32.totalorder %s22, 1
    %s24 = scalar_select %p23, 0, %s22
    %s25 = sadd.s32 1, %s16
    %s26 = scalar_select %p23, %s25, %s16
    %p27 = scmp.ge.s32.totalorder %s26, 2
    %s28 = scalar_select %p27, 0, %s26
    %s29 = ssub.s32 %s16, %s28
    %s30 = ssub.s32 %s17, %s24
    %s31 = sor.u32 %s29, %s30
    %p32 = scmp.eq.s32.totalorder %s31, 0
    %s34 = sadd.s32 %s33, 1
    %s35 = scalar_select %p32, %s33, %s34
    %p38 = pneg %p32
    %p39 = scmp.eq.s32.totalorder %s9, 1
    %p40 = por %p38, %p39
    %p41 = scmp.ne.s32.totalorder %s33, %s36
    %p42 = scmp.eq.s32.totalorder %s9, 0
    %p43 = por %p41, %p42
    %p44 = scmp.ne.s32.totalorder %s33, %s36
    %p45 = scmp.eq.s32.totalorder %s14, 1
    %p46 = por %p44, %p45
    %p47 = scmp.ne.s32.totalorder %s36, %s37
    %p48 = scmp.eq.s32.totalorder %s14, 0
    %p49 = por %p47, %p48
    %p50 = scmp.ne.s32.totalorder %s36, %s37
    %p51 = scmp.eq.s32.totalorder %s15, 1
    %p52 = por %p50, %p51
    %p54 = scmp.ne.s32.totalorder %s37, %s53
    %p55 = scmp.eq.s32.totalorder %s15, 0
    %p56 = por %p54, %p55
    %s58 = sadd.s32 %s57, 1
    %p61 = scmp.eq.s32.totalorder %s9, 1
    %p62 = scmp.ne.s32.totalorder %s57, %s59
    %p63 = scmp.eq.s32.totalorder %s9, 0
    %p64 = por %p62, %p63
    %p65 = scmp.ne.s32.totalorder %s57, %s59
    %p66 = scmp.eq.s32.totalorder %s14, 1
    %p67 = por %p65, %p66
    %p68 = scmp.ne.s32.totalorder %s59, %s60
    %p69 = scmp.eq.s32.totalorder %s14, 0
    %p70 = por %p68, %p69
    %p71 = scmp.ne.s32.totalorder %s59, %s60
    %p72 = scmp.eq.s32.totalorder %s15, 1
    %p73 = por %p71, %p72
    %p75 = scmp.ne.s32.totalorder %s60, %s74
    %p76 = scmp.eq.s32.totalorder %s15, 0
    %p77 = por %p75, %p76
    %s79 = sadd.s32 %s78, 1
    %p82 = scmp.eq.s32.totalorder %s9, 1
    %p83 = scmp.ne.s32.totalorder %s78, %s80
    %p84 = scmp.eq.s32.totalorder %s9, 0
    %p85 = por %p83, %p84
    %p86 = scmp.ne.s32.totalorder %s78, %s80
    %p87 = scmp.eq.s32.totalorder %s14, 1
    %p88 = por %p86, %p87
    %p89 = scmp.ne.s32.totalorder %s80, %s81
    %p90 = scmp.eq.s32.totalorder %s14, 0
    %p91 = por %p89, %p90
    %p92 = scmp.ne.s32.totalorder %s80, %s81
    %p93 = scmp.eq.s32.totalorder %s15, 1
    %p94 = por %p92, %p93
    %p96 = scmp.ne.s32.totalorder %s81, %s95
    %p97 = scmp.eq.s32.totalorder %s15, 0
    %p98 = por %p96, %p97
    %s99 = ssub.s32 %s16, %s28
    %s100 = ssub.s32 %s17, %s24
    %s101 = sor.u32 %s99, %s100
    %p102 = scmp.eq.s32.totalorder %s101, 0
    %s104 = sadd.s32 %s103, 1
    %s105 = scalar_select %p102, %s103, %s104
    %p108 = pneg %p102
    %p109 = scmp.eq.s32.totalorder %s9, 1
    %p110 = por %p108, %p109
    %p111 = scmp.ne.s32.totalorder %s103, %s106
    %p112 = scmp.eq.s32.totalorder %s9, 0
    %p113 = por %p111, %p112
    %p114 = scmp.ne.s32.totalorder %s103, %s106
    %p115 = scmp.eq.s32.totalorder %s14, 1
    %p116 = por %p114, %p115
    %p117 = scmp.ne.s32.totalorder %s106, %s107
    %p118 = scmp.eq.s32.totalorder %s14, 0
    %p119 = por %p117, %p118
    %p120 = scmp.ne.s32.totalorder %s106, %s107
    %p121 = scmp.eq.s32.totalorder %s15, 1
    %p122 = por %p120, %p121
    %p124 = scmp.ne.s32.totalorder %s107, %s123
    %p125 = scmp.eq.s32.totalorder %s15, 0
    %p126 = por %p124, %p125
    %p127 = scmp.le.s32.totalorder 1, %s9
    %p128 = scmp.lt.s32.totalorder %s9, 3
    %p129 = pnand %p127, %p128
    %p130 = pneg %p129
    // Predicated region
    $region9: #{tpu_custom_call.1} parent=5 // pred_check
      _
    $region10: #{tpu_custom_call.1} parent=5 // pred_check_branch
      %132 = sbr.rel (%p129) target = $region12
    $region11: #{tpu_custom_call.1} parent=5 // pred_region
      %s133 = ssub.s32 %s9, 1
      // Predicated region
      $region13: #{tpu_custom_call.1} parent=11 // pred_check
        %p134 = pneg %p70
      $region14: #{tpu_custom_call.1} parent=11 // pred_check_branch
        %136 = sbr.rel (%p134) target = $region16
      $region15: #{tpu_custom_call.1} parent=11 // pred_region
        _
      $region16: #{tpu_custom_call.1} parent=11 // pred_fallthru
        _
      // Predicated region
      $region17: #{tpu_custom_call.1} parent=11 // pred_check
        %p137 = pneg %p91
      $region18: #{tpu_custom_call.1} parent=11 // pred_check_branch
        %139 = sbr.rel (%p137) target = $region20
      $region19: #{tpu_custom_call.1} parent=11 // pred_region
        _
      $region20: #{tpu_custom_call.1} parent=11 // pred_fallthru
        _
    $region12: #{tpu_custom_call.1} parent=5 // pred_fallthru
      _
    %p140 = scmp.lt.s32.totalorder %s9, 2
    // Predicated region
    $region21: #{tpu_custom_call.1} parent=5 // pred_check
      %p141 = pneg %p140
    $region22: #{tpu_custom_call.1} parent=5 // pred_check_branch
      %143 = sbr.rel (%p141) target = $region24
    $region23: #{tpu_custom_call.1} parent=5 // pred_region
      // Predicated region
      $region25: #{tpu_custom_call.1} parent=23 // pred_check
        %p144 = pneg %p43
      $region26: #{tpu_custom_call.1} parent=23 // pred_check_branch
        %146 = sbr.rel (%p144) target = $region28
      $region27: #{tpu_custom_call.1} parent=23 // pred_region
        %s147 = smul.u32 40, %s17
        %p148 = scmp.lt.s32.totalorder %s16, 1
        %s149 = scalar_select %p148, %s16, 1
        %p150 = scmp.lt.s32.totalorder %s147, 39
        %s151 = scalar_select %p150, %s147, 39
        %s152 = smul.addr %s149, 40
        %s153 = sadd.s32 %s151, %s152
        %s154 = smul.addr %s153, 8
        %s155 = scalar_lea.vmem %s0, %s154
        %s156 = smul.u32 40, %s17
      $region28: #{tpu_custom_call.1} parent=23 // pred_fallthru
        _
    $region24: #{tpu_custom_call.1} parent=5 // pred_fallthru
      _
    %p157 = scmp.le.s32.totalorder 1, %s9
    %p158 = scmp.lt.s32.totalorder %s9, 3
    %p159 = pnand %p157, %p158
    %p160 = pneg %p159
    // Predicated region
    $region29: #{tpu_custom_call.1} parent=5 // pred_check
      _
    $region30: #{tpu_custom_call.1} parent=5 // pred_check_branch
      %162 = sbr.rel (%p159) target = $region32
    $region31: #{tpu_custom_call.1} parent=5 // pred_region
      %s163 = ssub.s32 %s9, 1
      %s164 = smul.u32 40, %s19
      %p165 = scmp.lt.s32.totalorder %s18, 1
      %s166 = scalar_select %p165, %s18, 1
      %p167 = scmp.lt.s32.totalorder %s164, 39
      %s168 = scalar_select %p167, %s164, 39
      %s169 = smul.addr %s166, 40
      %s170 = sadd.s32 %s168, %s169
      %s171 = smul.addr %s170, 8
      %s172 = scalar_lea.vmem %s0, %s171
      %p173 = pneg %p49
      %p174 = pneg %p46
      %p175 = pneg %p70
      %p176 = pneg %p67
      %p177 = pneg %p91
      %p178 = pneg %p88
      %p179 = pneg %p119
      %p180 = pneg %p116
      %s181 = smul.u32 40, %s19
      %p182 = scmp.lt.s32.totalorder %s18, 1
      %s183 = scalar_select %p182, %s18, 1
      %p184 = scmp.lt.s32.totalorder %s181, 39
      %s185 = scalar_select %p184, %s181, 39
      %s186 = smul.addr %s183, 40
      %s187 = sadd.s32 %s185, %s186
      %s188 = smul.addr %s187, 4
      %s189 = scalar_lea.vmem %s3, %s188
      %s190 = smul.u32 40, %s19
      %p191 = scmp.lt.s32.totalorder %s18, 1
      %s192 = scalar_select %p191, %s18, 1
      %p193 = scmp.lt.s32.totalorder %s190, 39
      %s194 = scalar_select %p193, %s190, 39
      %s195 = smul.addr %s192, 40
      %s196 = sadd.s32 %s194, %s195
      %s197 = smul.addr %s196, 8
      %s198 = scalar_lea.vmem %s0, %s197
      %s199 = smul.u32 40, %s19
      %s200 = smul.u32 40, %s19
      %p201 = scmp.lt.s32.totalorder %s18, 1
      %s202 = scalar_select %p201, %s18, 1
      %p203 = scmp.lt.s32.totalorder %s200, 39
      %s204 = scalar_select %p203, %s200, 39
      %s205 = smul.addr %s202, 40
      %s206 = sadd.s32 %s204, %s205
      %s207 = smul.addr %s206, 4
      %s208 = scalar_lea.vmem %s3, %s207
      %s209 = smul.u32 40, %s19
      %v210 = vld [vmem:[%s198] sm:$0xff]
      %v211 = vld [vmem:[%s198 + $0x8] sm:$0xff]
      %v212 = vld [vmem:[%s198 + $0x10] sm:$0xff]
      %v213 = vld [vmem:[%s198 + $0x18] sm:$0xff]
      %v214 = vld [vmem:[%s198 + $0x20] sm:$0xff]
      %v215 = vld [vmem:[%s198 + $0x28] sm:$0xff]
      %v216 = vld [vmem:[%s198 + $0x30] sm:$0xff]
      %v217 = vld [vmem:[%s198 + $0x38] sm:$0xff]
      %v218 = vld [vmem:[%s198 + $0x40] sm:$0xff]
      %v219 = vld [vmem:[%s198 + $0x48] sm:$0xff]
      %v220 = vld [vmem:[%s198 + $0x50] sm:$0xff]
      %v221 = vld [vmem:[%s198 + $0x58] sm:$0xff]
      %v222 = vld [vmem:[%s198 + $0x60] sm:$0xff]
      %v223 = vld [vmem:[%s198 + $0x68] sm:$0xff]
      %v224 = vld [vmem:[%s198 + $0x70] sm:$0xff]
      %v225 = vld [vmem:[%s198 + $0x78] sm:$0xff]
      %v226 = vld [vmem:[%s198 + $0x80] sm:$0xff]
      %v227 = vld [vmem:[%s198 + $0x88] sm:$0xff]
      %v228 = vld [vmem:[%s198 + $0x90] sm:$0xff]
      %v229 = vld [vmem:[%s198 + $0x98] sm:$0xff]
      %v230 = vld [vmem:[%s198 + $0xa0] sm:$0xff]
      %v231 = vld [vmem:[%s198 + $0xa8] sm:$0xff]
      %v232 = vld [vmem:[%s198 + $0xb0] sm:$0xff]
      %v233 = vld [vmem:[%s198 + $0xb8] sm:$0xff]
      %v234 = vld [vmem:[%s198 + $0xc0] sm:$0xff]
      %v235 = vld [vmem:[%s198 + $0xc8] sm:$0xff]
      %v236 = vld [vmem:[%s198 + $0xd0] sm:$0xff]
      %v237 = vld [vmem:[%s198 + $0xd8] sm:$0xff]
      %v238 = vld [vmem:[%s198 + $0xe0] sm:$0xff]
      %v239 = vld [vmem:[%s198 + $0xe8] sm:$0xff]
      %v240 = vld [vmem:[%s198 + $0xf0] sm:$0xff]
      %v241 = vld [vmem:[%s198 + $0xf8] sm:$0xff]
      %v242 = vld [vmem:[%s198 + $0x100] sm:$0xff]
      %v243 = vld [vmem:[%s198 + $0x108] sm:$0xff]
      %v244 = vld [vmem:[%s198 + $0x110] sm:$0xff]
      %v245 = vld [vmem:[%s198 + $0x118] sm:$0xff]
      %v246 = vld [vmem:[%s198 + $0x120] sm:$0xff]
      %v247 = vld [vmem:[%s198 + $0x128] sm:$0xff]
      %v248 = vld [vmem:[%s198 + $0x130] sm:$0xff]
      %v249 = vld [vmem:[%s198 + $0x138] sm:$0xff]
      %v250 = vld [vmem:[%s1] sm:$0xff]
      %v251 = vld [vmem:[%s1 + $0x8] sm:$0xff]
      %v252 = vld [vmem:[%s1 + $0x10] sm:$0xff]
      %v253 = vld [vmem:[%s1 + $0x18] sm:$0xff]
      %v254 = vld [vmem:[%s2] sm:$0x1]
      %v256 = vlaneseq
      %v257 = vshrl.u32 %v256, 7
      %v258 = vsub.s32 0, %v257
      %v259 = vrot.slane %v254, %v258
      %vm261 = vcmask 261120
      %v263 = vsel %vm261, %v210, 0
      %v266 = vsel %vm261, %v211, 0
      %v269 = vsel %vm261, %v212, 0
      %v272 = vsel %vm261, %v213, 0
      %v275 = vsel %vm261, %v214, 0
      %v278 = vsel %vm261, %v215, 0
      %v281 = vsel %vm261, %v216, 0
      %v284 = vsel %vm261, %v217, 0
      %v287 = vsel %vm261, %v218, 0
      %v290 = vsel %vm261, %v219, 0
      %v293 = vsel %vm261, %v220, 0
      %v296 = vsel %vm261, %v221, 0
      %v299 = vsel %vm261, %v222, 0
      %v302 = vsel %vm261, %v223, 0
      %v305 = vsel %vm261, %v224, 0
      %v308 = vsel %vm261, %v225, 0
      %v311 = vsel %vm261, %v226, 0
      %v314 = vsel %vm261, %v227, 0
      %v317 = vsel %vm261, %v228, 0
      %v320 = vsel %vm261, %v229, 0
      %v323 = vsel %vm261, %v230, 0
      %v326 = vsel %vm261, %v231, 0
      %v329 = vsel %vm261, %v232, 0
      %v332 = vsel %vm261, %v233, 0
      %v335 = vsel %vm261, %v234, 0
      %v338 = vsel %vm261, %v235, 0
      %v341 = vsel %vm261, %v236, 0
      %v344 = vsel %vm261, %v237, 0
      %v347 = vsel %vm261, %v238, 0
      %v350 = vsel %vm261, %v239, 0
      %v353 = vsel %vm261, %v240, 0
      %v356 = vsel %vm261, %v241, 0
      %v359 = vsel %vm261, %v242, 0
      %v362 = vsel %vm261, %v243, 0
      %v365 = vsel %vm261, %v244, 0
      %v368 = vsel %vm261, %v245, 0
      %v371 = vsel %vm261, %v246, 0
      %v374 = vsel %vm261, %v247, 0
      %v377 = vsel %vm261, %v248, 0
      %v380 = vsel %vm261, %v249, 0
      %382 = vmatprep.subr.mxu0 0.0
      %383 = vmatpush1.msra.mxu0 0.0
      %384 = vmatprep.subr.mxu0 0.0
      %385 = vmatpush1.msra.mxu0 0.0
      %386 = vmatprep.subr.mxu0 0.0
      %387 = vmatpush1.msra.mxu0 0.0
      %388 = vmatprep.subr.mxu0 0.0
      %389 = vmatpush1.msra.mxu0 0.0
      %390 = vmatprep.subr.mxu0 0.0
      %391 = vmatpush1.msra.mxu0 0.0
      %392 = vmatprep.subr.mxu0 0.0
      %393 = vmatpush1.msra.mxu0 0.0
      %394 = vmatprep.subr.mxu0 0.0
      %395 = vmatpush1.msra.mxu0 0.0
      %396 = vmatprep.subr.mxu0 0.0
      %397 = vmatpush1.msra.mxu0 0.0
      %398 = vmatprep.subr.mxu0 0.0
      %399 = vmatpush1.msra.mxu0 0.0
      %400 = vmatprep.subr.mxu0 0.0
      %401 = vmatpush1.msra.mxu0 0.0
      %402 = vmatprep.subr.mxu0 0.0
      %403 = vmatpush1.msra.mxu0 0.0
      %404 = vmatprep.subr.mxu0 0.0
      %405 = vmatpush1.msra.mxu0 0.0
      %406 = vmatprep.subr.mxu0 0.0
      %407 = vmatpush1.msra.mxu0 %v253
      %408 = vmatprep.subr.mxu0 0.0
      %409 = vmatpush1.msra.mxu0 %v252
      %410 = vmatprep.subr.mxu0 0.0
      %411 = vmatpush1.msra.mxu0 %v251
      %412 = vmatprep.subr.mxu0 0.0
      %413 = vmatpush1.msra.mxu0 %v250
      %414 = vmatprep.subr.mxu0 0.0
      %415 = vmatpush2.msra.mxu0 0.0
      %416 = vmatprep.subr.mxu0 0.0
      %417 = vmatpush2.msra.mxu0 0.0
      %418 = vmatprep.subr.mxu0 0.0
      %419 = vmatpush2.msra.mxu0 0.0
      %420 = vmatprep.subr.mxu0 0.0
      %421 = vmatpush2.msra.mxu0 0.0
      %422 = vmatprep.subr.mxu0 0.0
      %423 = vmatpush2.msra.mxu0 0.0
      %424 = vmatprep.subr.mxu0 0.0
      %425 = vmatpush2.msra.mxu0 0.0
      %426 = vmatprep.subr.mxu0 0.0
      %427 = vmatpush2.msra.mxu0 0.0
      %428 = vmatprep.subr.mxu0 0.0
      %429 = vmatpush2.msra.mxu0 0.0
      %430 = vmatprep.subr.mxu0 0.0
      %431 = vmatpush2.msra.mxu0 0.0
      %432 = vmatprep.subr.mxu0 0.0
      %433 = vmatpush2.msra.mxu0 0.0
      %434 = vmatprep.subr.mxu0 0.0
      %435 = vmatpush2.msra.mxu0 0.0
      %436 = vmatprep.subr.mxu0 0.0
      %437 = vmatpush2.msra.mxu0 0.0
      %438 = vmatprep.subr.mxu0 0.0
      %439 = vmatpush2.msra.mxu0 0.0
      %440 = vmatprep.subr.mxu0 0.0
      %441 = vmatpush2.msra.mxu0 0.0
      %442 = vmatprep.subr.mxu0 0.0
      %443 = vmatpush2.msra.mxu0 0.0
      %444 = vmatprep.subr.mxu0 0.0
      %445 = vmatpush2.msra.mxu0 0.0
      %446 = vmatprep.mubr.f32.mxu0 0.0
      %447 = vmatmul.mubr.f32.gmra.mxu0 %v263
      %v448 = vpop.f32.mrf.mxu0
      %v449 = vadd.f32 %v259, %v448
      %v450 = vpop.f32.mrf.mxu0
      %451 = vmatprep.mubr.f32.mxu0 0.0
      %452 = vmatmul.mubr.f32.gmra.mxu0 %v266
      %v453 = vpop.f32.mrf.mxu0
      %v454 = vadd.f32 %v259, %v453
      %v455 = vpop.f32.mrf.mxu0
      %456 = vmatprep.mubr.f32.mxu0 0.0
      %457 = vmatmul.mubr.f32.gmra.mxu0 %v269
      %v458 = vpop.f32.mrf.mxu0
      %v459 = vadd.f32 %v259, %v458
      %v460 = vpop.f32.mrf.mxu0
      %461 = vmatprep.mubr.f32.mxu0 0.0
      %462 = vmatmul.mubr.f32.gmra.mxu0 %v272
      %v463 = vpop.f32.mrf.mxu0
      %v464 = vadd.f32 %v259, %v463
      %v465 = vpop.f32.mrf.mxu0
      %466 = vmatprep.mubr.f32.mxu0 0.0
      %467 = vmatmul.mubr.f32.gmra.mxu0 %v275
      %v468 = vpop.f32.mrf.mxu0
      %v469 = vadd.f32 %v259, %v468
      %v470 = vpop.f32.mrf.mxu0
      %471 = vmatprep.mubr.f32.mxu0 0.0
      %472 = vmatmul.mubr.f32.gmra.mxu0 %v278
      %v473 = vpop.f32.mrf.mxu0
      %v474 = vadd.f32 %v259, %v473
      %v475 = vpop.f32.mrf.mxu0
      %476 = vmatprep.mubr.f32.mxu0 0.0
      %477 = vmatmul.mubr.f32.gmra.mxu0 %v281
      %v478 = vpop.f32.mrf.mxu0
      %v479 = vadd.f32 %v259, %v478
      %v480 = vpop.f32.mrf.mxu0
      %481 = vmatprep.mubr.f32.mxu0 0.0
      %482 = vmatmul.mubr.f32.gmra.mxu0 %v284
      %v483 = vpop.f32.mrf.mxu0
      %v484 = vadd.f32 %v259, %v483
      %v485 = vpop.f32.mrf.mxu0
      %486 = vmatprep.mubr.f32.mxu0 0.0
      %487 = vmatmul.mubr.f32.gmra.mxu0 %v287
      %v488 = vpop.f32.mrf.mxu0
      %v489 = vadd.f32 %v259, %v488
      %v490 = vpop.f32.mrf.mxu0
      %491 = vmatprep.mubr.f32.mxu0 0.0
      %492 = vmatmul.mubr.f32.gmra.mxu0 %v290
      %v493 = vpop.f32.mrf.mxu0
      %v494 = vadd.f32 %v259, %v493
      %v495 = vpop.f32.mrf.mxu0
      %496 = vmatprep.mubr.f32.mxu0 0.0
      %497 = vmatmul.mubr.f32.gmra.mxu0 %v293
      %v498 = vpop.f32.mrf.mxu0
      %v499 = vadd.f32 %v259, %v498
      %v500 = vpop.f32.mrf.mxu0
      %501 = vmatprep.mubr.f32.mxu0 0.0
      %502 = vmatmul.mubr.f32.gmra.mxu0 %v296
      %v503 = vpop.f32.mrf.mxu0
      %v504 = vadd.f32 %v259, %v503
      %v505 = vpop.f32.mrf.mxu0
      %506 = vmatprep.mubr.f32.mxu0 0.0
      %507 = vmatmul.mubr.f32.gmra.mxu0 %v299
      %v508 = vpop.f32.mrf.mxu0
      %v509 = vadd.f32 %v259, %v508
      %v510 = vpop.f32.mrf.mxu0
      %511 = vmatprep.mubr.f32.mxu0 0.0
      %512 = vmatmul.mubr.f32.gmra.mxu0 %v302
      %v513 = vpop.f32.mrf.mxu0
      %v514 = vadd.f32 %v259, %v513
      %v515 = vpop.f32.mrf.mxu0
      %516 = vmatprep.mubr.f32.mxu0 0.0
      %517 = vmatmul.mubr.f32.gmra.mxu0 %v305
      %v518 = vpop.f32.mrf.mxu0
      %v519 = vadd.f32 %v259, %v518
      %v520 = vpop.f32.mrf.mxu0
      %521 = vmatprep.mubr.f32.mxu0 0.0
      %522 = vmatmul.mubr.f32.gmra.mxu0 %v308
      %v523 = vpop.f32.mrf.mxu0
      %v524 = vadd.f32 %v259, %v523
      %v525 = vpop.f32.mrf.mxu0
      %526 = vmatprep.mubr.f32.mxu0 0.0
      %527 = vmatmul.mubr.f32.gmra.mxu0 %v311
      %v528 = vpop.f32.mrf.mxu0
      %v529 = vadd.f32 %v259, %v528
      %v530 = vpop.f32.mrf.mxu0
      %531 = vmatprep.mubr.f32.mxu0 0.0
      %532 = vmatmul.mubr.f32.gmra.mxu0 %v314
      %v533 = vpop.f32.mrf.mxu0
      %v534 = vadd.f32 %v259, %v533
      %v535 = vpop.f32.mrf.mxu0
      %536 = vmatprep.mubr.f32.mxu0 0.0
      %537 = vmatmul.mubr.f32.gmra.mxu0 %v317
      %v538 = vpop.f32.mrf.mxu0
      %v539 = vadd.f32 %v259, %v538
      %v540 = vpop.f32.mrf.mxu0
      %541 = vmatprep.mubr.f32.mxu0 0.0
      %542 = vmatmul.mubr.f32.gmra.mxu0 %v320
      %v543 = vpop.f32.mrf.mxu0
      %v544 = vadd.f32 %v259, %v543
      %v545 = vpop.f32.mrf.mxu0
      %546 = vmatprep.mubr.f32.mxu0 0.0
      %547 = vmatmul.mubr.f32.gmra.mxu0 %v323
      %v548 = vpop.f32.mrf.mxu0
      %v549 = vadd.f32 %v259, %v548
      %v550 = vpop.f32.mrf.mxu0
      %551 = vmatprep.mubr.f32.mxu0 0.0
      %552 = vmatmul.mubr.f32.gmra.mxu0 %v326
      %v553 = vpop.f32.mrf.mxu0
      %v554 = vadd.f32 %v259, %v553
      %v555 = vpop.f32.mrf.mxu0
      %556 = vmatprep.mubr.f32.mxu0 0.0
      %557 = vmatmul.mubr.f32.gmra.mxu0 %v329
      %v558 = vpop.f32.mrf.mxu0
      %v559 = vadd.f32 %v259, %v558
      %v560 = vpop.f32.mrf.mxu0
      %561 = vmatprep.mubr.f32.mxu0 0.0
      %562 = vmatmul.mubr.f32.gmra.mxu0 %v332
      %v563 = vpop.f32.mrf.mxu0
      %v564 = vadd.f32 %v259, %v563
      %v565 = vpop.f32.mrf.mxu0
      %566 = vmatprep.mubr.f32.mxu0 0.0
      %567 = vmatmul.mubr.f32.gmra.mxu0 %v335
      %v568 = vpop.f32.mrf.mxu0
      %v569 = vadd.f32 %v259, %v568
      %v570 = vpop.f32.mrf.mxu0
      %571 = vmatprep.mubr.f32.mxu0 0.0
      %572 = vmatmul.mubr.f32.gmra.mxu0 %v338
      %v573 = vpop.f32.mrf.mxu0
      %v574 = vadd.f32 %v259, %v573
      %v575 = vpop.f32.mrf.mxu0
      %576 = vmatprep.mubr.f32.mxu0 0.0
      %577 = vmatmul.mubr.f32.gmra.mxu0 %v341
      %v578 = vpop.f32.mrf.mxu0
      %v579 = vadd.f32 %v259, %v578
      %v580 = vpop.f32.mrf.mxu0
      %581 = vmatprep.mubr.f32.mxu0 0.0
      %582 = vmatmul.mubr.f32.gmra.mxu0 %v344
      %v583 = vpop.f32.mrf.mxu0
      %v584 = vadd.f32 %v259, %v583
      %v585 = vpop.f32.mrf.mxu0
      %586 = vmatprep.mubr.f32.mxu0 0.0
      %587 = vmatmul.mubr.f32.gmra.mxu0 %v347
      %v588 = vpop.f32.mrf.mxu0
      %v589 = vadd.f32 %v259, %v588
      %v590 = vpop.f32.mrf.mxu0
      %591 = vmatprep.mubr.f32.mxu0 0.0
      %592 = vmatmul.mubr.f32.gmra.mxu0 %v350
      %v593 = vpop.f32.mrf.mxu0
      %v594 = vadd.f32 %v259, %v593
      %v595 = vpop.f32.mrf.mxu0
      %596 = vmatprep.mubr.f32.mxu0 0.0
      %597 = vmatmul.mubr.f32.gmra.mxu0 %v353
      %v598 = vpop.f32.mrf.mxu0
      %v599 = vadd.f32 %v259, %v598
      %v600 = vpop.f32.mrf.mxu0
      %601 = vmatprep.mubr.f32.mxu0 0.0
      %602 = vmatmul.mubr.f32.gmra.mxu0 %v356
      %v603 = vpop.f32.mrf.mxu0
      %v604 = vadd.f32 %v259, %v603
      %v605 = vpop.f32.mrf.mxu0
      %606 = vmatprep.mubr.f32.mxu0 0.0
      %607 = vmatmul.mubr.f32.gmra.mxu0 %v359
      %v608 = vpop.f32.mrf.mxu0
      %v609 = vadd.f32 %v259, %v608
      %v610 = vpop.f32.mrf.mxu0
      %611 = vmatprep.mubr.f32.mxu0 0.0
      %612 = vmatmul.mubr.f32.gmra.mxu0 %v362
      %v613 = vpop.f32.mrf.mxu0
      %v614 = vadd.f32 %v259, %v613
      %v615 = vpop.f32.mrf.mxu0
      %616 = vmatprep.mubr.f32.mxu0 0.0
      %617 = vmatmul.mubr.f32.gmra.mxu0 %v365
      %v618 = vpop.f32.mrf.mxu0
      %v619 = vadd.f32 %v259, %v618
      %v620 = vpop.f32.mrf.mxu0
      %621 = vmatprep.mubr.f32.mxu0 0.0
      %622 = vmatmul.mubr.f32.gmra.mxu0 %v368
      %v623 = vpop.f32.mrf.mxu0
      %v624 = vadd.f32 %v259, %v623
      %v625 = vpop.f32.mrf.mxu0
      %626 = vmatprep.mubr.f32.mxu0 0.0
      %627 = vmatmul.mubr.f32.gmra.mxu0 %v371
      %v628 = vpop.f32.mrf.mxu0
      %v629 = vadd.f32 %v259, %v628
      %v630 = vpop.f32.mrf.mxu0
      %631 = vmatprep.mubr.f32.mxu0 0.0
      %632 = vmatmul.mubr.f32.gmra.mxu0 %v374
      %v633 = vpop.f32.mrf.mxu0
      %v634 = vadd.f32 %v259, %v633
      %v635 = vpop.f32.mrf.mxu0
      %636 = vmatprep.mubr.f32.mxu0 0.0
      %637 = vmatmul.mubr.f32.gmra.mxu0 %v377
      %v638 = vpop.f32.mrf.mxu0
      %v639 = vadd.f32 %v259, %v638
      %v640 = vpop.f32.mrf.mxu0
      %641 = vmatprep.mubr.f32.mxu0 0.0
      %642 = vmatmul.mubr.f32.gmra.mxu0 %v380
      %v643 = vpop.f32.mrf.mxu0
      %v644 = vadd.f32 %v259, %v643
      %v645 = vpop.f32.mrf.mxu0
      %646 = vdwg.mxu0
      %v647 = vpack.c.bf16 %v454, %v449
      %v648 = vpack.c.bf16 %v464, %v459
      %v649 = vpack.c.bf16 %v474, %v469
      %v650 = vpack.c.bf16 %v484, %v479
      %v651 = vpack.c.bf16 %v494, %v489
      %v652 = vpack.c.bf16 %v504, %v499
      %v653 = vpack.c.bf16 %v514, %v509
      %v654 = vpack.c.bf16 %v524, %v519
      %v655 = vpack.c.bf16 %v534, %v529
      %v656 = vpack.c.bf16 %v544, %v539
      %v657 = vpack.c.bf16 %v554, %v549
      %v658 = vpack.c.bf16 %v564, %v559
      %v659 = vpack.c.bf16 %v574, %v569
      %v660 = vpack.c.bf16 %v584, %v579
      %v661 = vpack.c.bf16 %v594, %v589
      %v662 = vpack.c.bf16 %v604, %v599
      %v663 = vpack.c.bf16 %v614, %v609
      %v664 = vpack.c.bf16 %v624, %v619
      %v665 = vpack.c.bf16 %v634, %v629
      %v666 = vpack.c.bf16 %v644, %v639
      %v687 = vunpack.c.l.b16 %v647
      %v688 = vunpack.c.h.b16 %v647
      %v689 = vunpack.c.l.b16 %v648
      %v690 = vunpack.c.h.b16 %v648
      %v691 = vunpack.c.l.b16 %v649
      %v692 = vunpack.c.h.b16 %v649
      %v693 = vunpack.c.l.b16 %v650
      %v694 = vunpack.c.h.b16 %v650
      %v695 = vunpack.c.l.b16 %v651
      %v696 = vunpack.c.h.b16 %v651
      %v697 = vunpack.c.l.b16 %v652
      %v698 = vunpack.c.h.b16 %v652
      %v699 = vunpack.c.l.b16 %v653
      %v700 = vunpack.c.h.b16 %v653
      %v701 = vunpack.c.l.b16 %v654
      %v702 = vunpack.c.h.b16 %v654
      %v703 = vunpack.c.l.b16 %v655
      %v704 = vunpack.c.h.b16 %v655
      %v705 = vunpack.c.l.b16 %v656
      %v706 = vunpack.c.h.b16 %v656
      %v707 = vunpack.c.l.b16 %v657
      %v708 = vunpack.c.h.b16 %v657
      %v709 = vunpack.c.l.b16 %v658
      %v710 = vunpack.c.h.b16 %v658
      %v711 = vunpack.c.l.b16 %v659
      %v712 = vunpack.c.h.b16 %v659
      %v713 = vunpack.c.l.b16 %v660
      %v714 = vunpack.c.h.b16 %v660
      %v715 = vunpack.c.l.b16 %v661
      %v716 = vunpack.c.h.b16 %v661
      %v717 = vunpack.c.l.b16 %v662
      %v718 = vunpack.c.h.b16 %v662
      %v719 = vunpack.c.l.b16 %v663
      %v720 = vunpack.c.h.b16 %v663
      %v721 = vunpack.c.l.b16 %v664
      %v722 = vunpack.c.h.b16 %v664
      %v723 = vunpack.c.l.b16 %v665
      %v724 = vunpack.c.h.b16 %v665
      %v725 = vunpack.c.l.b16 %v666
      %v726 = vunpack.c.h.b16 %v666
      %v727 = vpack.c.b16 %v687, %v687
      %v728 = vpack.c.b16 %v688, %v688
      %v729 = vpack.c.b16 %v689, %v689
      %v730 = vpack.c.b16 %v690, %v690
      %v731 = vpack.c.b16 %v691, %v691
      %v732 = vpack.c.b16 %v692, %v692
      %v733 = vpack.c.b16 %v693, %v693
      %v734 = vpack.c.b16 %v694, %v694
      %v735 = vpack.c.b16 %v695, %v695
      %v736 = vpack.c.b16 %v696, %v696
      %v737 = vpack.c.b16 %v697, %v697
      %v738 = vpack.c.b16 %v698, %v698
      %v739 = vpack.c.b16 %v699, %v699
      %v740 = vpack.c.b16 %v700, %v700
      %v741 = vpack.c.b16 %v701, %v701
      %v742 = vpack.c.b16 %v702, %v702
      %v743 = vpack.c.b16 %v703, %v703
      %v744 = vpack.c.b16 %v704, %v704
      %v745 = vpack.c.b16 %v705, %v705
      %v746 = vpack.c.b16 %v706, %v706
      %v747 = vpack.c.b16 %v707, %v707
      %v748 = vpack.c.b16 %v708, %v708
      %v749 = vpack.c.b16 %v709, %v709
      %v750 = vpack.c.b16 %v710, %v710
      %v751 = vpack.c.b16 %v711, %v711
      %v752 = vpack.c.b16 %v712, %v712
      %v753 = vpack.c.b16 %v713, %v713
      %v754 = vpack.c.b16 %v714, %v714
      %v755 = vpack.c.b16 %v715, %v715
      %v756 = vpack.c.b16 %v716, %v716
      %v757 = vpack.c.b16 %v717, %v717
      %v758 = vpack.c.b16 %v718, %v718
      %v759 = vpack.c.b16 %v719, %v719
      %v760 = vpack.c.b16 %v720, %v720
      %v761 = vpack.c.b16 %v721, %v721
      %v762 = vpack.c.b16 %v722, %v722
      %v763 = vpack.c.b16 %v723, %v723
      %v764 = vpack.c.b16 %v724, %v724
      %v765 = vpack.c.b16 %v725, %v725
      %v766 = vpack.c.b16 %v726, %v726
      %vm807 = vcmask 257024
      %808 = vst.msk [vmem:[%s208] sm:$0xf] %vm807, %v727
      %809 = vst.msk [vmem:[%s208 + $0x4] sm:$0xf] %vm807, %v728
      %810 = vst.msk [vmem:[%s208 + $0x8] sm:$0xf] %vm807, %v729
      %811 = vst.msk [vmem:[%s208 + $0xc] sm:$0xf] %vm807, %v730
      %812 = vst.msk [vmem:[%s208 + $0x10] sm:$0xf] %vm807, %v731
      %813 = vst.msk [vmem:[%s208 + $0x14] sm:$0xf] %vm807, %v732
      %814 = vst.msk [vmem:[%s208 + $0x18] sm:$0xf] %vm807, %v733
      %815 = vst.msk [vmem:[%s208 + $0x1c] sm:$0xf] %vm807, %v734
      %816 = vst.msk [vmem:[%s208 + $0x20] sm:$0xf] %vm807, %v735
      %817 = vst.msk [vmem:[%s208 + $0x24] sm:$0xf] %vm807, %v736
      %818 = vst.msk [vmem:[%s208 + $0x28] sm:$0xf] %vm807, %v737
      %819 = vst.msk [vmem:[%s208 + $0x2c] sm:$0xf] %vm807, %v738
      %820 = vst.msk [vmem:[%s208 + $0x30] sm:$0xf] %vm807, %v739
      %821 = vst.msk [vmem:[%s208 + $0x34] sm:$0xf] %vm807, %v740
      %822 = vst.msk [vmem:[%s208 + $0x38] sm:$0xf] %vm807, %v741
      %823 = vst.msk [vmem:[%s208 + $0x3c] sm:$0xf] %vm807, %v742
      %824 = vst.msk [vmem:[%s208 + $0x40] sm:$0xf] %vm807, %v743
      %825 = vst.msk [vmem:[%s208 + $0x44] sm:$0xf] %vm807, %v744
      %826 = vst.msk [vmem:[%s208 + $0x48] sm:$0xf] %vm807, %v745
      %827 = vst.msk [vmem:[%s208 + $0x4c] sm:$0xf] %vm807, %v746
      %828 = vst.msk [vmem:[%s208 + $0x50] sm:$0xf] %vm807, %v747
      %829 = vst.msk [vmem:[%s208 + $0x54] sm:$0xf] %vm807, %v748
      %830 = vst.msk [vmem:[%s208 + $0x58] sm:$0xf] %vm807, %v749
      %831 = vst.msk [vmem:[%s208 + $0x5c] sm:$0xf] %vm807, %v750
      %832 = vst.msk [vmem:[%s208 + $0x60] sm:$0xf] %vm807, %v751
      %833 = vst.msk [vmem:[%s208 + $0x64] sm:$0xf] %vm807, %v752
      %834 = vst.msk [vmem:[%s208 + $0x68] sm:$0xf] %vm807, %v753
      %835 = vst.msk [vmem:[%s208 + $0x6c] sm:$0xf] %vm807, %v754
      %836 = vst.msk [vmem:[%s208 + $0x70] sm:$0xf] %vm807, %v755
      %837 = vst.msk [vmem:[%s208 + $0x74] sm:$0xf] %vm807, %v756
      %838 = vst.msk [vmem:[%s208 + $0x78] sm:$0xf] %vm807, %v757
      %839 = vst.msk [vmem:[%s208 + $0x7c] sm:$0xf] %vm807, %v758
      %840 = vst.msk [vmem:[%s208 + $0x80] sm:$0xf] %vm807, %v759
      %841 = vst.msk [vmem:[%s208 + $0x84] sm:$0xf] %vm807, %v760
      %842 = vst.msk [vmem:[%s208 + $0x88] sm:$0xf] %vm807, %v761
      %843 = vst.msk [vmem:[%s208 + $0x8c] sm:$0xf] %vm807, %v762
      %844 = vst.msk [vmem:[%s208 + $0x90] sm:$0xf] %vm807, %v763
      %845 = vst.msk [vmem:[%s208 + $0x94] sm:$0xf] %vm807, %v764
      %846 = vst.msk [vmem:[%s208 + $0x98] sm:$0xf] %vm807, %v765
      %847 = vst.msk [vmem:[%s208 + $0x9c] sm:$0xf] %vm807, %v766
      %s848 = smul.u32 40, %s19
      %p849 = scmp.lt.s32.totalorder %s18, 1
      %s850 = scalar_select %p849, %s18, 1
      %p851 = scmp.lt.s32.totalorder %s848, 39
      %s852 = scalar_select %p851, %s848, 39
      %s853 = smul.addr %s850, 40
      %s854 = sadd.s32 %s852, %s853
      %s855 = smul.addr %s854, 4
      %s856 = scalar_lea.vmem %s3, %s855
      // Predicated region
      $region33: #{tpu_custom_call.1} parent=31 // pred_check
        %p857 = pneg %p116
      $region34: #{tpu_custom_call.1} parent=31 // pred_check_branch
        %859 = sbr.rel (%p857) target = $region36
      $region35: #{tpu_custom_call.1} parent=31 // pred_region
        %s860 = smul.u32 40, %s19
      $region36: #{tpu_custom_call.1} parent=31 // pred_fallthru
        _
    $region32: #{tpu_custom_call.1} parent=5 // pred_fallthru
      _
    %p861 = scmp.le.s32.totalorder 2, %s9
    // Predicated region
    $region37: #{tpu_custom_call.1} parent=5 // pred_check
      %p862 = pneg %p861
    $region38: #{tpu_custom_call.1} parent=5 // pred_check_branch
      %864 = sbr.rel (%p862) target = $region40
    $region39: #{tpu_custom_call.1} parent=5 // pred_region
      %s865 = ssub.s32 %s9, 2
      // Predicated region
      $region41: #{tpu_custom_call.1} parent=39 // pred_check
        %p866 = pneg %p122
      $region42: #{tpu_custom_call.1} parent=39 // pred_check_branch
        %868 = sbr.rel (%p866) target = $region44
      $region43: #{tpu_custom_call.1} parent=39 // pred_region
        %s869 = smul.u32 40, %s21
        %p870 = scmp.lt.s32.totalorder %s20, 1
        %s871 = scalar_select %p870, %s20, 1
        %p872 = scmp.lt.s32.totalorder %s869, 39
        %s873 = scalar_select %p872, %s869, 39
        %s874 = smul.addr %s871, 40
        %s875 = sadd.s32 %s873, %s874
        %s876 = smul.addr %s875, 4
        %s877 = scalar_lea.vmem %s3, %s876
      $region44: #{tpu_custom_call.1} parent=39 // pred_fallthru
        _
    $region40: #{tpu_custom_call.1} parent=5 // pred_fallthru
      _
  $region6: #{tpu_custom_call.1} parent=0 // loop_footer
    %s13 = sadd.s32 1, %s9
  $region7: #{tpu_custom_call.1} parent=0 // loop_footer_branch
    %8 = sbr.rel target = $region3
  $region8: #{tpu_custom_call.1} parent=0 // loop_exit
    _

</llo_original>
